<compile_context>
chip_gen: v6e
topology: v6e:2x2x1
jax: 0.10.0
libtpu: 0.0.40
codegen_flags: <defaults>
</compile_context>

<pallas_src>
import math

import jax
import jax.numpy as jnp
from jax.experimental import pallas as pl
from jax.experimental.pallas import tpu as pltpu


NEG_SLOPE = 0.01  # torch.nn.LeakyReLU default


def _round_up(n, m):
    return ((n + m - 1) // m) * m


def _leaky_relu(h):
    # max(h, a*h) == LeakyReLU(h) for 0 < a < 1 (mul + max: 2 VALU ops).
    return jnp.maximum(h, NEG_SLOPE * h)


def _mlp_kernel(x_ref, y_ref, w1x_ref, w1y_ref, b1_ref, w2_ref, b2_ref,
                w3_ref, b3_ref, o_ref):
    cdt = w1x_ref.dtype          # matmul operand dtype (f32 or bf16)

    # layer 1: split-K matmul replaces concat([x, y], 1) @ w1.
    h = jnp.dot(x_ref[...], w1x_ref[...], preferred_element_type=jnp.float32)
    h = h + jnp.dot(y_ref[...], w1y_ref[...], preferred_element_type=jnp.float32)
    # bias add + activation stay f32 (exact, and v5e's VPU has no bf16).
    h = _leaky_relu(h + b1_ref[...])

    # layer 2
    h = jnp.dot(h.astype(cdt), w2_ref[...], preferred_element_type=jnp.float32)
    h = _leaky_relu(h + b2_ref[...])

    # layer 3: contract the hidden dim with the batch on the MXU's N axis so
    # the result is a lane-dense [1, TB] row (not a 1-lane [TB, 1] column).
    out = jax.lax.dot_general(
        w3_ref[...], h.astype(cdt),
        dimension_numbers=(((1,), (1,)), ((), ())),
        preferred_element_type=jnp.float32,
    )  # [1, TB]
    o_ref[...] = (out + b3_ref[0, 0]).astype(o_ref.dtype)


def basic_dense_t_forward(x, y, params, permute=False, key=None,
                          block_b=8192, use_bf16=False):
    """Pallas implementation of BasicDenseT.forward. Returns [B, 1] float32.

    block_b: max batch-tile rows. Default 8192 keeps per-tile VMEM ~25-35 MiB
    (fits all generations incl. v7x's 64 MiB physical VMEM once
    vmem_limit_bytes is raised, which this wrapper does automatically).
    use_bf16: run the matmuls with bf16 operands / f32 accumulation
    (numerics-tolerance decision vs. the f32 PyTorch reference).
    """
    if permute:
        # torch.randperm(x.shape[0]) analogue (wrapper glue, not the hot path).
        assert key is not None, "need a PRNG key when permute=True"
        x = x[jax.random.permutation(key, x.shape[0])]

    B, x_dim = x.shape
    y_dim = y.shape[1]
    w1, b1, w2, b2, w3, b3 = params
    H = w1.shape[1]

    # Split linear_1's weight so the kernel never needs a concatenated [x|y]
    # activation in HBM.
    w1x = w1[:x_dim]
    w1y = w1[x_dim:]
    w3_row = w3.T                       # [1, H]

    # Zero-pad the hidden dim to a lane-aligned width (exact: padded hidden
    # units have zero weights/bias and contribute nothing downstream).
    hp = _round_up(H, 128)
    pad_h = hp - H
    if pad_h:
        w1x = jnp.pad(w1x, ((0, 0), (0, pad_h)))
        w1y = jnp.pad(w1y, ((0, 0), (0, pad_h)))
        b1p = jnp.pad(b1, ((0, 0), (0, pad_h)))
        w2p = jnp.pad(w2, ((0, pad_h), (0, pad_h)))
        b2p = jnp.pad(b2, ((0, 0), (0, pad_h)))
        w3_row = jnp.pad(w3_row, ((0, 0), (0, pad_h)))
    else:
        b1p, w2p, b2p = b1, w2, b2

    # Optional bf16 matmul operands (MXU-native); biases stay f32 so the
    # accumulate / bias / LeakyReLU chain is f32 on every generation.
    if use_bf16:
        x = x.astype(jnp.bfloat16)
        y = y.astype(jnp.bfloat16)
        w1x = w1x.astype(jnp.bfloat16)
        w1y = w1y.astype(jnp.bfloat16)
        w2p = w2p.astype(jnp.bfloat16)
        w3_row = w3_row.astype(jnp.bfloat16)

    # ---- batch tiling --------------------------------------------------
    tb = min(block_b, _round_up(B, 8))
    tb = _round_up(tb, 8)
    if B >= 256:
        # Keep at least 2 grid steps (megacore sharding on v7x) and keep the
        # lane width of the [1, tb] output block a multiple of 128.
        tb = min(tb, _round_up(-(-B // 2), 128))
        tb = _round_up(tb, 128)
    elif tb < B:
        tb = _round_up(tb, 128)
    b_pad = _round_up(B, tb)
    if b_pad != B:
        x = jnp.pad(x, ((0, b_pad - B), (0, 0)))
        y = jnp.pad(y, ((0, b_pad - B), (0, 0)))
    grid = (b_pad // tb,)

    # ---- explicit scoped-VMEM budget (per-tile) ------------------------
    item = x.dtype.itemsize
    in_stream = 2 * 2 * tb * 128 * item      # x,y blocks (lane-padded), 2 bufs
    out_stream = 2 * 8 * tb * 4              # [1, tb] f32 out blocks, 2 bufs
    interm = 4 * tb * hp * 4                 # a few [tb, hp] f32 temporaries
    weights = 2 * ((x_dim + y_dim) * hp + hp * hp + hp) * item \
        + 2 * 2 * hp * 4 + 4096
    vmem_limit = int(min(max(in_stream + out_stream + interm + weights
                             + (4 << 20), 32 << 20), 48 << 20))

    flops = 2 * b_pad * ((x_dim + y_dim) * hp + hp * hp + hp)
    bytes_accessed = (item * b_pad * (x_dim + y_dim) + 4 * b_pad
                      + item * ((x_dim + y_dim + 1) * hp + hp * hp)
                      + 4 * (2 * hp + 1))
    cost = pl.CostEstimate(flops=flops, transcendentals=0,
                           bytes_accessed=bytes_accessed)

    out_row = pl.pallas_call(
        _mlp_kernel,
        out_shape=jax.ShapeDtypeStruct((1, b_pad), jnp.float32),
        grid=grid,
        in_specs=[
            pl.BlockSpec((tb, x_dim), lambda i: (i, 0)),   # x tile (streamed)
            pl.BlockSpec((tb, y_dim), lambda i: (i, 0)),   # y tile (streamed)
            pl.BlockSpec((x_dim, hp), lambda i: (0, 0)),   # weights: resident
            pl.BlockSpec((y_dim, hp), lambda i: (0, 0)),
            pl.BlockSpec((1, hp), lambda i: (0, 0)),
            pl.BlockSpec((hp, hp), lambda i: (0, 0)),
            pl.BlockSpec((1, hp), lambda i: (0, 0)),
            pl.BlockSpec((1, hp), lambda i: (0, 0)),
            pl.BlockSpec(memory_space=pltpu.MemorySpace.SMEM),  # b3 scalar
        ],
        out_specs=pl.BlockSpec((1, tb), lambda i: (0, i)),
        compiler_params=pltpu.CompilerParams(
            dimension_semantics=("parallel",),
            vmem_limit_bytes=vmem_limit),
        cost_estimate=cost,
    )(x, y, w1x, w1y, b1p, w2p, b2p, w3_row, b3)

    # [1, B_pad] (lane-dense) -> [B, 1] to match the PyTorch module.
    return out_row[0, :B][:, None]


def init_params(key, x_dim, y_dim, inner_dim):
    """torch.nn.Linear-style init: U(-1/sqrt(fan_in), 1/sqrt(fan_in)).
    Weights stored as [in_features, out_features]."""
    keys = jax.random.split(key, 6)

    def lin(kw, kb, fan_in, fan_out):
        bound = 1.0 / math.sqrt(fan_in)
        w = jax.random.uniform(kw, (fan_in, fan_out), jnp.float32, -bound, bound)
        b = jax.random.uniform(kb, (1, fan_out), jnp.float32, -bound, bound)
        return w, b

    w1, b1 = lin(keys[0], keys[1], x_dim + y_dim, inner_dim)
    w2, b2 = lin(keys[2], keys[3], inner_dim, inner_dim)
    w3, b3 = lin(keys[4], keys[5], inner_dim, 1)
    return (w1, b1, w2, b2, w3, b3)


def _reference(x, y, params):
    w1, b1, w2, b2, w3, b3 = params
    h = jnp.concatenate([x, y], axis=1) @ w1 + b1
    h = jnp.maximum(h, NEG_SLOPE * h)
    h = h @ w2 + b2
    h = jnp.maximum(h, NEG_SLOPE * h)
    return h @ w3 + b3


if __name__ == "__main__":
    # Small shapes consistent with the module: batch=8, X_dim=16, Y_dim=16,
    # inner_dim=32.
    B, X_DIM, Y_DIM, INNER = 8, 16, 16, 32

    key = jax.random.PRNGKey(0)
    kx, ky, kp = jax.random.split(key, 3)
    x = jax.random.normal(kx, (B, X_DIM), jnp.float32)
    y = jax.random.normal(ky, (B, Y_DIM), jnp.float32)
    params = init_params(kp, X_DIM, Y_DIM, INNER)

    # 1) Single-tile path.
    out = jax.block_until_ready(basic_dense_t_forward(x, y, params))
    ref = _reference(x, y, params)
    assert out.shape == (B, 1), out.shape
    assert jnp.allclose(out, ref, atol=1e-4, rtol=1e-4), (out, ref)

    # 2) Multi-tile path (grid > 1, ragged batch -> zero-padded tail) with a
    # small block size to exercise the streamed pipeline.
    B2 = 300
    kx2, ky2 = jax.random.split(jax.random.PRNGKey(1))
    x2 = jax.random.normal(kx2, (B2, X_DIM), jnp.float32)
    y2 = jax.random.normal(ky2, (B2, Y_DIM), jnp.float32)
    out2 = jax.block_until_ready(
        basic_dense_t_forward(x2, y2, params, block_b=128))
    ref2 = _reference(x2, y2, params)
    assert out2.shape == (B2, 1), out2.shape
    assert jnp.allclose(out2, ref2, atol=1e-4, rtol=1e-4), (out2, ref2)

    # 3) Default (large-tile) config: B >= 256 forces grid >= 2 (megacore split).
    B3 = 1024
    kx3, ky3 = jax.random.split(jax.random.PRNGKey(2))
    x3 = jax.random.normal(kx3, (B3, X_DIM), jnp.float32)
    y3 = jax.random.normal(ky3, (B3, Y_DIM), jnp.float32)
    out3 = jax.block_until_ready(basic_dense_t_forward(x3, y3, params))
    ref3 = _reference(x3, y3, params)
    assert out3.shape == (B3, 1), out3.shape
    assert jnp.allclose(out3, ref3, atol=1e-4, rtol=1e-4), (out3, ref3)

    # 4) bf16 matmul path (f32 accumulation) at loose tolerance.
    out4 = jax.block_until_ready(
        basic_dense_t_forward(x3, y3, params, use_bf16=True))
    assert out4.shape == (B3, 1), out4.shape
    assert jnp.allclose(out4, ref3, atol=5e-2, rtol=5e-2), (out4, ref3)

    print("KERNEL_OK")
</pallas_src>

<mosaic_0001>
module attributes {stable_mosaic.version = 11 : i64} {
  func.func @_mlp_kernel(%arg0: i32, %arg1: memref<8x16xf32, #tpu.memory_space<vmem>>, %arg2: memref<8x16xf32, #tpu.memory_space<vmem>>, %arg3: memref<16x128xf32, #tpu.memory_space<vmem>>, %arg4: memref<16x128xf32, #tpu.memory_space<vmem>>, %arg5: memref<1x128xf32, #tpu.memory_space<vmem>>, %arg6: memref<128x128xf32, #tpu.memory_space<vmem>>, %arg7: memref<1x128xf32, #tpu.memory_space<vmem>>, %arg8: memref<1x128xf32, #tpu.memory_space<vmem>>, %arg9: memref<1x1xf32, #tpu.memory_space<smem>>, %arg10: memref<1x8xf32, #tpu.memory_space<vmem>>) attributes {dimension_semantics = [#tpu.dimension_semantics<parallel>], iteration_bounds = array<i64: 1>, scalar_prefetch = 0 : i64, scratch_operands = 0 : i64, tpu.core_type = #tpu.core_type<tc>, window_params = [{transform_indices = @transform_0, window_bounds = array<i64: 8, 16>}, {transform_indices = @transform_1, window_bounds = array<i64: 8, 16>}, {pipeline_mode = #tpu.pipeline_mode<synchronous>, transform_indices = @transform_2, window_bounds = array<i64: 16, 128>}, {pipeline_mode = #tpu.pipeline_mode<synchronous>, transform_indices = @transform_3, window_bounds = array<i64: 16, 128>}, {pipeline_mode = #tpu.pipeline_mode<synchronous>, transform_indices = @transform_4, window_bounds = array<i64: 1, 128>}, {pipeline_mode = #tpu.pipeline_mode<synchronous>, transform_indices = @transform_5, window_bounds = array<i64: 128, 128>}, {pipeline_mode = #tpu.pipeline_mode<synchronous>, transform_indices = @transform_6, window_bounds = array<i64: 1, 128>}, {pipeline_mode = #tpu.pipeline_mode<synchronous>, transform_indices = @transform_7, window_bounds = array<i64: 1, 128>}, {transform_indices = @transform_8, window_bounds = array<i64: 1, 1>}, {transform_indices = @transform_9, window_bounds = array<i64: 1, 8>}]} {
    %c0 = arith.constant 0 : index
    %c0_0 = arith.constant 0 : index
    %0 = vector.load %arg1[%c0, %c0_0] : memref<8x16xf32, #tpu.memory_space<vmem>>, vector<8x16xf32>
    %c0_1 = arith.constant 0 : index
    %c0_2 = arith.constant 0 : index
    %1 = vector.load %arg3[%c0_1, %c0_2] : memref<16x128xf32, #tpu.memory_space<vmem>>, vector<16x128xf32>
    %cst = arith.constant dense<0.000000e+00> : vector<8x128xf32>
    %2 = tpu.matmul %0, %1, %cst {dimension_numbers = #tpu.dot_dimension_numbers<[1], [0], [0], [1], [0, 0, 1, 1], [], []>} : vector<8x16xf32>, vector<16x128xf32>, vector<8x128xf32> -> vector<8x128xf32>
    %c0_3 = arith.constant 0 : index
    %c0_4 = arith.constant 0 : index
    %3 = vector.load %arg2[%c0_3, %c0_4] : memref<8x16xf32, #tpu.memory_space<vmem>>, vector<8x16xf32>
    %c0_5 = arith.constant 0 : index
    %c0_6 = arith.constant 0 : index
    %4 = vector.load %arg4[%c0_5, %c0_6] : memref<16x128xf32, #tpu.memory_space<vmem>>, vector<16x128xf32>
    %cst_7 = arith.constant dense<0.000000e+00> : vector<8x128xf32>
    %5 = tpu.matmul %3, %4, %cst_7 {dimension_numbers = #tpu.dot_dimension_numbers<[1], [0], [0], [1], [0, 0, 1, 1], [], []>} : vector<8x16xf32>, vector<16x128xf32>, vector<8x128xf32> -> vector<8x128xf32>
    %6 = arith.addf %2, %5 : vector<8x128xf32>
    %c0_8 = arith.constant 0 : index
    %c0_9 = arith.constant 0 : index
    %7 = vector.load %arg5[%c0_8, %c0_9] : memref<1x128xf32, #tpu.memory_space<vmem>>, vector<1x128xf32>
    %8 = vector.broadcast %7 : vector<1x128xf32> to vector<8x128xf32>
    %9 = arith.addf %6, %8 : vector<8x128xf32>
    %cst_10 = arith.constant 0.00999999977 : f32
    %10 = vector.broadcast %cst_10 : f32 to vector<8x128xf32>
    %11 = arith.mulf %10, %9 : vector<8x128xf32>
    %12 = arith.maximumf %9, %11 : vector<8x128xf32>
    %c0_11 = arith.constant 0 : index
    %c0_12 = arith.constant 0 : index
    %13 = vector.load %arg6[%c0_11, %c0_12] : memref<128x128xf32, #tpu.memory_space<vmem>>, vector<128x128xf32>
    %cst_13 = arith.constant dense<0.000000e+00> : vector<8x128xf32>
    %14 = tpu.matmul %12, %13, %cst_13 {dimension_numbers = #tpu.dot_dimension_numbers<[1], [0], [0], [1], [0, 0, 1, 1], [], []>} : vector<8x128xf32>, vector<128x128xf32>, vector<8x128xf32> -> vector<8x128xf32>
    %c0_14 = arith.constant 0 : index
    %c0_15 = arith.constant 0 : index
    %15 = vector.load %arg7[%c0_14, %c0_15] : memref<1x128xf32, #tpu.memory_space<vmem>>, vector<1x128xf32>
    %16 = vector.broadcast %15 : vector<1x128xf32> to vector<8x128xf32>
    %17 = arith.addf %14, %16 : vector<8x128xf32>
    %cst_16 = arith.constant 0.00999999977 : f32
    %18 = vector.broadcast %cst_16 : f32 to vector<8x128xf32>
    %19 = arith.mulf %18, %17 : vector<8x128xf32>
    %20 = arith.maximumf %17, %19 : vector<8x128xf32>
    %c0_17 = arith.constant 0 : index
    %c0_18 = arith.constant 0 : index
    %21 = vector.load %arg8[%c0_17, %c0_18] : memref<1x128xf32, #tpu.memory_space<vmem>>, vector<1x128xf32>
    %cst_19 = arith.constant dense<0.000000e+00> : vector<1x8xf32>
    %22 = tpu.matmul %21, %20, %cst_19 {dimension_numbers = #tpu.dot_dimension_numbers<[1], [1], [0], [0], [0, 0, 1, 0], [], []>} : vector<1x128xf32>, vector<8x128xf32>, vector<1x8xf32> -> vector<1x8xf32>
    %c0_20 = arith.constant 0 : index
    %c0_21 = arith.constant 0 : index
    %23 = memref.load %arg9[%c0_20, %c0_21] : memref<1x1xf32, #tpu.memory_space<smem>>
    %24 = vector.broadcast %23 : f32 to vector<1x8xf32>
    %25 = arith.addf %22, %24 : vector<1x8xf32>
    %c0_22 = arith.constant 0 : index
    %c0_23 = arith.constant 0 : index
    %26 = vector.load %arg10[%c0_22, %c0_23] : memref<1x8xf32, #tpu.memory_space<vmem>>, vector<1x8xf32>
    tpu.vector_store %arg10[%c0_22, %c0_23], %25 {strides = array<i32>} : memref<1x8xf32, #tpu.memory_space<vmem>>, vector<1x8xf32>,
    return
  }
  func.func @transform_0(%arg0: i32) -> (i32, i32) {
    %c0_i32 = arith.constant 0 : i32
    %c0_i32_0 = arith.constant 0 : i32
    return %arg0, %c0_i32 : i32, i32
  }
  func.func @transform_1(%arg0: i32) -> (i32, i32) {
    %c0_i32 = arith.constant 0 : i32
    %c0_i32_0 = arith.constant 0 : i32
    return %arg0, %c0_i32 : i32, i32
  }
  func.func @transform_2(%arg0: i32) -> (i32, i32) {
    %c0_i32 = arith.constant 0 : i32
    %c0_i32_0 = arith.constant 0 : i32
    %c0_i32_1 = arith.constant 0 : i32
    return %c0_i32, %c0_i32_0 : i32, i32
  }
  func.func @transform_3(%arg0: i32) -> (i32, i32) {
    %c0_i32 = arith.constant 0 : i32
    %c0_i32_0 = arith.constant 0 : i32
    %c0_i32_1 = arith.constant 0 : i32
    return %c0_i32, %c0_i32_0 : i32, i32
  }
  func.func @transform_4(%arg0: i32) -> (i32, i32) {
    %c0_i32 = arith.constant 0 : i32
    %c0_i32_0 = arith.constant 0 : i32
    %c0_i32_1 = arith.constant 0 : i32
    return %c0_i32, %c0_i32_0 : i32, i32
  }
  func.func @transform_5(%arg0: i32) -> (i32, i32) {
    %c0_i32 = arith.constant 0 : i32
    %c0_i32_0 = arith.constant 0 : i32
    %c0_i32_1 = arith.constant 0 : i32
    return %c0_i32, %c0_i32_0 : i32, i32
  }
  func.func @transform_6(%arg0: i32) -> (i32, i32) {
    %c0_i32 = arith.constant 0 : i32
    %c0_i32_0 = arith.constant 0 : i32
    %c0_i32_1 = arith.constant 0 : i32
    return %c0_i32, %c0_i32_0 : i32, i32
  }
  func.func @transform_7(%arg0: i32) -> (i32, i32) {
    %c0_i32 = arith.constant 0 : i32
    %c0_i32_0 = arith.constant 0 : i32
    %c0_i32_1 = arith.constant 0 : i32
    return %c0_i32, %c0_i32_0 : i32, i32
  }
  func.func @transform_8(%arg0: i32) -> (i32, i32) {
    %c0_i32 = arith.constant 0 : i32
    %c0_i32_0 = arith.constant 0 : i32
    %c0_i32_1 = arith.constant 0 : i32
    return %c0_i32, %c0_i32_0 : i32, i32
  }
  func.func @transform_9(%arg0: i32) -> (i32, i32) {
    %c0_i32 = arith.constant 0 : i32
    %c0_i32_0 = arith.constant 0 : i32
    return %c0_i32, %arg0 : i32, i32
  }
}

</mosaic_0001>

<llo_original>
// kernel: tpu_custom_call.1
$region0: #{tpu_custom_call.1}
  #allocation0 [shape = 'u32[]', space=smem, size = 0x4, offset = 0x4, fixed_abs, tag = 'smem constant byte address 0x4 - core index']
  #allocation1 [shape = 'u32[144,128]{1,0:T(1,128)}', space=vmem, size = 0x12000, scoped, tag = 'internal scratch']
  #allocation2 [shape = 'f32[1,1]{1,0:T(1,128)S(6)}', space=smem, size = 0x200, scoped, tag = 'scoped memory for tpu_custom_call.1']
  %s0 = inlined_call_operand.hbm [shape: f32[8,16], index: 0, kind: input, shape index: {}]
  %s1 = inlined_call_operand.hbm [shape: f32[8,16], index: 1, kind: input, shape index: {}]
  %s2 = inlined_call_operand.hbm [shape: f32[16,128], index: 2, kind: input, shape index: {}]
  %s3 = inlined_call_operand.hbm [shape: f32[16,128], index: 3, kind: input, shape index: {}]
  %s4 = inlined_call_operand.vmem [shape: f32[1,128], index: 4, kind: input, shape index: {}]
  %s5 = inlined_call_operand.hbm [shape: f32[128,128], index: 5, kind: input, shape index: {}]
  %s6 = inlined_call_operand.vmem [shape: f32[1,128], index: 6, kind: input, shape index: {}]
  %s7 = inlined_call_operand.vmem [shape: f32[1,128], index: 7, kind: input, shape index: {}]
  %s8 = inlined_call_operand.<no memory space> [shape: f32[1,1], index: 8, kind: input, shape index: {}]
  %s9 = inlined_call_operand.hbm [shape: f32[1,8], index: 9, kind: output, shape index: {}]
  %s10 = sld [smem:[#allocation0]]
  $region66: #{tpu_custom_call.1} parent=0
    _
  %s12 = ssub.s32 1, %s10
  %s13 = scalar_select 0, %s12, %s10
  %14 = sst [smem:[#allocation2]] %s8
  $region1: #{tpu_custom_call.1} parent=0
    #allocation3 [shape = 'u8[4096]{0}', space=vmem, size = 0x1000, scoped, tag = 'input window, operand 0, single buffered']
    #allocation4 [shape = 's32[1]{0}', space=sflag, size = 0x4, scoped, tag = 'scoped memory for tpu_custom_call.1']
    #allocation5 [shape = 's32[1]{0}', space=sflag, size = 0x4, scoped, tag = 'scoped memory for tpu_custom_call.1']
    #allocation6 [shape = 'u8[4096]{0}', space=vmem, size = 0x1000, scoped, tag = 'input window, operand 1, single buffered']
    #allocation7 [shape = 's32[1]{0}', space=sflag, size = 0x4, scoped, tag = 'scoped memory for tpu_custom_call.1']
    #allocation8 [shape = 'u8[8192]{0}', space=vmem, size = 0x2000, scoped, tag = 'input window, operand 2, single buffered']
    #allocation9 [shape = 'u8[8192]{0}', space=vmem, size = 0x2000, scoped, tag = 'input window, operand 3, single buffered']
    #allocation10 [shape = 's32[1]{0}', space=sflag, size = 0x4, scoped, tag = 'scoped memory for tpu_custom_call.1']
    #allocation11 [shape = 'u8[65536]{0}', space=vmem, size = 0x10000, scoped, tag = 'input window, operand 5, single buffered']
    #allocation12 [shape = 'u8[512]{0}', space=vmem, size = 0x400, scoped, tag = 'output window, operand 0, single buffered']
    %15 = vsyncpa [#allocation4], 0
    %16 = vsyncpa [#allocation7], 0
    %17 = vsyncpa [#allocation10], 0
    %18 = vsyncpa [#allocation5], 0
    // Predicated region
    $region2: #{tpu_custom_call.1} parent=1 // pred_check
      _
    $region3: #{tpu_custom_call.1} parent=1 // pred_check_branch
      %20 = sbr.rel (0) target = $region5
    $region4: #{tpu_custom_call.1} parent=1 // pred_region
      %s22 = ssub.s32 128, 128
      %23 = vsyncadd [#allocation4], %s22
      %s25 = sshll.u32 [#allocation3], 4
      %s26 = int_to_ptr.vmem [resolvable:$true] %s25
      %28 = dma.hbm_to_vmem [thread:$0]  %s0, 128, %s26, [#allocation4]
    $region5: #{tpu_custom_call.1} parent=1 // pred_fallthru
      _
    // Predicated region
    $region6: #{tpu_custom_call.1} parent=1 // pred_check
      _
    $region7: #{tpu_custom_call.1} parent=1 // pred_check_branch
      %30 = sbr.rel (0) target = $region9
    $region8: #{tpu_custom_call.1} parent=1 // pred_region
      %s32 = ssub.s32 128, 128
      %33 = vsyncadd [#allocation7], %s32
      %s35 = sshll.u32 [#allocation6], 4
      %s36 = int_to_ptr.vmem [resolvable:$true] %s35
      %38 = dma.hbm_to_vmem [thread:$0]  %s1, 128, %s36, [#allocation7]
    $region9: #{tpu_custom_call.1} parent=1 // pred_fallthru
      _
    // Predicated region
    $region10: #{tpu_custom_call.1} parent=1 // pred_check
      _
    $region11: #{tpu_custom_call.1} parent=1 // pred_check_branch
      %40 = sbr.rel (0) target = $region13
    $region12: #{tpu_custom_call.1} parent=1 // pred_region
      %s42 = ssub.s32 256, 256
      %43 = vsyncadd [#allocation7], %s42
      %s44 = sshll.u32 [#allocation8], 4
      %s45 = int_to_ptr.vmem [resolvable:$true] %s44
      %50 = dma.hbm_to_vmem [thread:$0]  %s2, 256, %s45, [#allocation7], 128, 128, 8
    $region13: #{tpu_custom_call.1} parent=1 // pred_fallthru
      _
    // Predicated region
    $region14: #{tpu_custom_call.1} parent=1 // pred_check
      _
    $region15: #{tpu_custom_call.1} parent=1 // pred_check_branch
      %52 = sbr.rel (0) target = $region17
    $region16: #{tpu_custom_call.1} parent=1 // pred_region
      %s54 = ssub.s32 256, 256
      %55 = vsyncadd [#allocation10], %s54
      %s56 = sshll.u32 [#allocation9], 4
      %s57 = int_to_ptr.vmem [resolvable:$true] %s56
      %62 = dma.hbm_to_vmem [thread:$0]  %s3, 256, %s57, [#allocation10], 128, 128, 8
    $region17: #{tpu_custom_call.1} parent=1 // pred_fallthru
      _
    // Predicated region
    $region18: #{tpu_custom_call.1} parent=1 // pred_check
      _
    $region19: #{tpu_custom_call.1} parent=1 // pred_check_branch
      %64 = sbr.rel (0) target = $region21
    $region20: #{tpu_custom_call.1} parent=1 // pred_region
      _
    $region21: #{tpu_custom_call.1} parent=1 // pred_fallthru
      _
    // Predicated region
    $region22: #{tpu_custom_call.1} parent=1 // pred_check
      _
    $region23: #{tpu_custom_call.1} parent=1 // pred_check_branch
      %66 = sbr.rel (0) target = $region25
    $region24: #{tpu_custom_call.1} parent=1 // pred_region
      %s68 = ssub.s32 2048, 2048
      %69 = vsyncadd [#allocation10], %s68
      %s70 = sshll.u32 [#allocation11], 4
      %s71 = int_to_ptr.vmem [resolvable:$true] %s70
      %76 = dma.hbm_to_vmem [thread:$0]  %s5, 2048, %s71, [#allocation10], 128, 128, 8
    $region25: #{tpu_custom_call.1} parent=1 // pred_fallthru
      _
    // Predicated region
    $region26: #{tpu_custom_call.1} parent=1 // pred_check
      _
    $region27: #{tpu_custom_call.1} parent=1 // pred_check_branch
      %78 = sbr.rel (0) target = $region29
    $region28: #{tpu_custom_call.1} parent=1 // pred_region
      _
    $region29: #{tpu_custom_call.1} parent=1 // pred_fallthru
      _
    // Predicated region
    $region30: #{tpu_custom_call.1} parent=1 // pred_check
      _
    $region31: #{tpu_custom_call.1} parent=1 // pred_check_branch
      %80 = sbr.rel (0) target = $region33
    $region32: #{tpu_custom_call.1} parent=1 // pred_region
      _
    $region33: #{tpu_custom_call.1} parent=1 // pred_fallthru
      _
    // Predicated region
    $region34: #{tpu_custom_call.1} parent=1 // pred_check
      _
    $region35: #{tpu_custom_call.1} parent=1 // pred_check_branch
      %82 = sbr.rel (0) target = $region37
    $region36: #{tpu_custom_call.1} parent=1 // pred_region
      _
    $region37: #{tpu_custom_call.1} parent=1 // pred_fallthru
      _
    // Predicated region
    $region38: #{tpu_custom_call.1} parent=1 // pred_check
      _
    $region39: #{tpu_custom_call.1} parent=1 // pred_check_branch
      %84 = sbr.rel (0) target = $region41
    $region40: #{tpu_custom_call.1} parent=1 // pred_region
      %85 = dma.done [#allocation4], 128
    $region41: #{tpu_custom_call.1} parent=1 // pred_fallthru
      _
    // Predicated region
    $region42: #{tpu_custom_call.1} parent=1 // pred_check
      _
    $region43: #{tpu_custom_call.1} parent=1 // pred_check_branch
      %87 = sbr.rel (0) target = $region45
    $region44: #{tpu_custom_call.1} parent=1 // pred_region
      %88 = dma.done [#allocation7], 128
    $region45: #{tpu_custom_call.1} parent=1 // pred_fallthru
      _
    // Predicated region
    $region46: #{tpu_custom_call.1} parent=1 // pred_check
      _
    $region47: #{tpu_custom_call.1} parent=1 // pred_check_branch
      %90 = sbr.rel (0) target = $region49
    $region48: #{tpu_custom_call.1} parent=1 // pred_region
      %91 = dma.done [#allocation7], 256
    $region49: #{tpu_custom_call.1} parent=1 // pred_fallthru
      _
    // Predicated region
    $region50: #{tpu_custom_call.1} parent=1 // pred_check
      _
    $region51: #{tpu_custom_call.1} parent=1 // pred_check_branch
      %93 = sbr.rel (0) target = $region53
    $region52: #{tpu_custom_call.1} parent=1 // pred_region
      %94 = dma.done [#allocation10], 256
    $region53: #{tpu_custom_call.1} parent=1 // pred_fallthru
      _
    // Predicated region
    $region54: #{tpu_custom_call.1} parent=1 // pred_check
      _
    $region55: #{tpu_custom_call.1} parent=1 // pred_check_branch
      %96 = sbr.rel (0) target = $region57
    $region56: #{tpu_custom_call.1} parent=1 // pred_region
      %97 = dma.done [#allocation10], 2048
    $region57: #{tpu_custom_call.1} parent=1 // pred_fallthru
      _
    %v98 = vld [vmem:[#allocation3] sm:$0xff]
    %v99 = vld [vmem:[#allocation8] sm:$0xff]
    %v100 = vld [vmem:[#allocation8 + $0x8] sm:$0xff]
    %v101 = vld [vmem:[#allocation6] sm:$0xff]
    %v102 = vld [vmem:[#allocation9] sm:$0xff]
    %v103 = vld [vmem:[#allocation9 + $0x8] sm:$0xff]
    %vm104 = vcmask 130048
    %v106 = vsel %vm104, %v101, 0
    %108 = vmatprep.subr.mxu0 0.0
    %109 = vmatpush1.msra.mxu0 0.0
    %110 = vmatprep.subr.mxu0 0.0
    %111 = vmatpush1.msra.mxu0 0.0
    %112 = vmatprep.subr.mxu0 0.0
    %113 = vmatpush1.msra.mxu0 0.0
    %114 = vmatprep.subr.mxu0 0.0
    %115 = vmatpush1.msra.mxu0 0.0
    %116 = vmatprep.subr.mxu0 0.0
    %117 = vmatpush1.msra.mxu0 0.0
    %118 = vmatprep.subr.mxu0 0.0
    %119 = vmatpush1.msra.mxu0 0.0
    %120 = vmatprep.subr.mxu0 0.0
    %121 = vmatpush1.msra.mxu0 0.0
    %122 = vmatprep.subr.mxu0 0.0
    %123 = vmatpush1.msra.mxu0 0.0
    %124 = vmatprep.subr.mxu0 0.0
    %125 = vmatpush1.msra.mxu0 0.0
    %126 = vmatprep.subr.mxu0 0.0
    %127 = vmatpush1.msra.mxu0 0.0
    %128 = vmatprep.subr.mxu0 0.0
    %129 = vmatpush1.msra.mxu0 0.0
    %130 = vmatprep.subr.mxu0 0.0
    %131 = vmatpush1.msra.mxu0 0.0
    %132 = vmatprep.subr.mxu0 0.0
    %133 = vmatpush1.msra.mxu0 0.0
    %134 = vmatprep.subr.mxu0 0.0
    %135 = vmatpush1.msra.mxu0 0.0
    %136 = vmatprep.subr.mxu0 0.0
    %137 = vmatpush1.msra.mxu0 %v103
    %138 = vmatprep.subr.mxu0 0.0
    %139 = vmatpush1.msra.mxu0 %v102
    %140 = vmatprep.subr.mxu0 0.0
    %141 = vmatpush2.msra.mxu0 0.0
    %142 = vmatprep.subr.mxu0 0.0
    %143 = vmatpush2.msra.mxu0 0.0
    %144 = vmatprep.subr.mxu0 0.0
    %145 = vmatpush2.msra.mxu0 0.0
    %146 = vmatprep.subr.mxu0 0.0
    %147 = vmatpush2.msra.mxu0 0.0
    %148 = vmatprep.subr.mxu0 0.0
    %149 = vmatpush2.msra.mxu0 0.0
    %150 = vmatprep.subr.mxu0 0.0
    %151 = vmatpush2.msra.mxu0 0.0
    %152 = vmatprep.subr.mxu0 0.0
    %153 = vmatpush2.msra.mxu0 0.0
    %154 = vmatprep.subr.mxu0 0.0
    %155 = vmatpush2.msra.mxu0 0.0
    %156 = vmatprep.subr.mxu0 0.0
    %157 = vmatpush2.msra.mxu0 0.0
    %158 = vmatprep.subr.mxu0 0.0
    %159 = vmatpush2.msra.mxu0 0.0
    %160 = vmatprep.subr.mxu0 0.0
    %161 = vmatpush2.msra.mxu0 0.0
    %162 = vmatprep.subr.mxu0 0.0
    %163 = vmatpush2.msra.mxu0 0.0
    %164 = vmatprep.subr.mxu0 0.0
    %165 = vmatpush2.msra.mxu0 0.0
    %166 = vmatprep.subr.mxu0 0.0
    %167 = vmatpush2.msra.mxu0 0.0
    %168 = vmatprep.subr.mxu0 0.0
    %169 = vmatpush2.msra.mxu0 0.0
    %170 = vmatprep.subr.mxu0 0.0
    %171 = vmatpush2.msra.mxu0 0.0
    %172 = vmatprep.mubr.f32.mxu0 0.0
    %173 = vmatmul.mubr.f32.gmra.mxu0 %v106
    %v174 = vpop.f32.mrf.mxu0
    %v175 = vadd.f32 0.0, %v174
    %v176 = vpop.f32.mrf.mxu0
    %177 = vdwg.mxu0
    %v179 = vsel %vm104, %v98, 0
    %181 = vmatprep.subr.mxu0 0.0
    %182 = vmatpush1.msra.mxu0 0.0
    %183 = vmatprep.subr.mxu0 0.0
    %184 = vmatpush1.msra.mxu0 0.0
    %185 = vmatprep.subr.mxu0 0.0
    %186 = vmatpush1.msra.mxu0 0.0
    %187 = vmatprep.subr.mxu0 0.0
    %188 = vmatpush1.msra.mxu0 0.0
    %189 = vmatprep.subr.mxu0 0.0
    %190 = vmatpush1.msra.mxu0 0.0
    %191 = vmatprep.subr.mxu0 0.0
    %192 = vmatpush1.msra.mxu0 0.0
    %193 = vmatprep.subr.mxu0 0.0
    %194 = vmatpush1.msra.mxu0 0.0
    %195 = vmatprep.subr.mxu0 0.0
    %196 = vmatpush1.msra.mxu0 0.0
    %197 = vmatprep.subr.mxu0 0.0
    %198 = vmatpush1.msra.mxu0 0.0
    %199 = vmatprep.subr.mxu0 0.0
    %200 = vmatpush1.msra.mxu0 0.0
    %201 = vmatprep.subr.mxu0 0.0
    %202 = vmatpush1.msra.mxu0 0.0
    %203 = vmatprep.subr.mxu0 0.0
    %204 = vmatpush1.msra.mxu0 0.0
    %205 = vmatprep.subr.mxu0 0.0
    %206 = vmatpush1.msra.mxu0 0.0
    %207 = vmatprep.subr.mxu0 0.0
    %208 = vmatpush1.msra.mxu0 0.0
    %209 = vmatprep.subr.mxu0 0.0
    %210 = vmatpush1.msra.mxu0 %v100
    %211 = vmatprep.subr.mxu0 0.0
    %212 = vmatpush1.msra.mxu0 %v99
    %213 = vmatprep.subr.mxu0 0.0
    %214 = vmatpush2.msra.mxu0 0.0
    %215 = vmatprep.subr.mxu0 0.0
    %216 = vmatpush2.msra.mxu0 0.0
    %217 = vmatprep.subr.mxu0 0.0
    %218 = vmatpush2.msra.mxu0 0.0
    %219 = vmatprep.subr.mxu0 0.0
    %220 = vmatpush2.msra.mxu0 0.0
    %221 = vmatprep.subr.mxu0 0.0
    %222 = vmatpush2.msra.mxu0 0.0
    %223 = vmatprep.subr.mxu0 0.0
    %224 = vmatpush2.msra.mxu0 0.0
    %225 = vmatprep.subr.mxu0 0.0
    %226 = vmatpush2.msra.mxu0 0.0
    %227 = vmatprep.subr.mxu0 0.0
    %228 = vmatpush2.msra.mxu0 0.0
    %229 = vmatprep.subr.mxu0 0.0
    %230 = vmatpush2.msra.mxu0 0.0
    %231 = vmatprep.subr.mxu0 0.0
    %232 = vmatpush2.msra.mxu0 0.0
    %233 = vmatprep.subr.mxu0 0.0
    %234 = vmatpush2.msra.mxu0 0.0
    %235 = vmatprep.subr.mxu0 0.0
    %236 = vmatpush2.msra.mxu0 0.0
    %237 = vmatprep.subr.mxu0 0.0
    %238 = vmatpush2.msra.mxu0 0.0
    %239 = vmatprep.subr.mxu0 0.0
    %240 = vmatpush2.msra.mxu0 0.0
    %241 = vmatprep.subr.mxu0 0.0
    %242 = vmatpush2.msra.mxu0 0.0
    %243 = vmatprep.subr.mxu0 0.0
    %244 = vmatpush2.msra.mxu0 0.0
    %245 = vmatprep.mubr.f32.mxu0 0.0
    %246 = vmatmul.mubr.f32.gmra.mxu0 %v179
    %v247 = vpop.f32.mrf.mxu0
    %v248 = vadd.f32 %v175, %v247
    %v249 = vpop.f32.mrf.mxu0
    %250 = vdwg.mxu0
    %v251 = vld [vmem:[%s4] sm:$0x1]
    %v253 = vlaneseq
    %v254 = vshrl.u32 %v253, 7
    %v255 = vsub.s32 0, %v254
    %v256 = vrot.slane %v251, %v255
    %v258 = vadd.f32 %v248, %v256
    %v259 = vmul.f32 %v258, 0.01
    %v260 = vmax.f32 %v258, %v259
    %v261 = vld [vmem:[#allocation11] sm:$0xff]
    %v262 = vld [vmem:[#allocation11 + $0x8] sm:$0xff]
    %v263 = vld [vmem:[#allocation11 + $0x10] sm:$0xff]
    %v264 = vld [vmem:[#allocation11 + $0x18] sm:$0xff]
    %v265 = vld [vmem:[#allocation11 + $0x20] sm:$0xff]
    %v266 = vld [vmem:[#allocation11 + $0x28] sm:$0xff]
    %v267 = vld [vmem:[#allocation11 + $0x30] sm:$0xff]
    %v268 = vld [vmem:[#allocation11 + $0x38] sm:$0xff]
    %v269 = vld [vmem:[#allocation11 + $0x40] sm:$0xff]
    %v270 = vld [vmem:[#allocation11 + $0x48] sm:$0xff]
    %v271 = vld [vmem:[#allocation11 + $0x50] sm:$0xff]
    %v272 = vld [vmem:[#allocation11 + $0x58] sm:$0xff]
    %v273 = vld [vmem:[#allocation11 + $0x60] sm:$0xff]
    %v274 = vld [vmem:[#allocation11 + $0x68] sm:$0xff]
    %v275 = vld [vmem:[#allocation11 + $0x70] sm:$0xff]
    %v276 = vld [vmem:[#allocation11 + $0x78] sm:$0xff]
    %v277 = vld [vmem:[%s6] sm:$0x1]
    %v279 = vlaneseq
    %v280 = vshrl.u32 %v279, 7
    %v281 = vsub.s32 0, %v280
    %v282 = vrot.slane %v277, %v281
    %284 = vmatprep.subr.mxu0 0.0
    %285 = vmatpush1.msra.mxu0 %v276
    %286 = vmatprep.subr.mxu0 0.0
    %287 = vmatpush1.msra.mxu0 %v275
    %288 = vmatprep.subr.mxu0 0.0
    %289 = vmatpush1.msra.mxu0 %v274
    %290 = vmatprep.subr.mxu0 0.0
    %291 = vmatpush1.msra.mxu0 %v273
    %292 = vmatprep.subr.mxu0 0.0
    %293 = vmatpush1.msra.mxu0 %v272
    %294 = vmatprep.subr.mxu0 0.0
    %295 = vmatpush1.msra.mxu0 %v271
    %296 = vmatprep.subr.mxu0 0.0
    %297 = vmatpush1.msra.mxu0 %v270
    %298 = vmatprep.subr.mxu0 0.0
    %299 = vmatpush1.msra.mxu0 %v269
    %300 = vmatprep.subr.mxu0 0.0
    %301 = vmatpush1.msra.mxu0 %v268
    %302 = vmatprep.subr.mxu0 0.0
    %303 = vmatpush1.msra.mxu0 %v267
    %304 = vmatprep.subr.mxu0 0.0
    %305 = vmatpush1.msra.mxu0 %v266
    %306 = vmatprep.subr.mxu0 0.0
    %307 = vmatpush1.msra.mxu0 %v265
    %308 = vmatprep.subr.mxu0 0.0
    %309 = vmatpush1.msra.mxu0 %v264
    %310 = vmatprep.subr.mxu0 0.0
    %311 = vmatpush1.msra.mxu0 %v263
    %312 = vmatprep.subr.mxu0 0.0
    %313 = vmatpush1.msra.mxu0 %v262
    %314 = vmatprep.subr.mxu0 0.0
    %315 = vmatpush1.msra.mxu0 %v261
    %316 = vmatprep.subr.mxu0 0.0
    %317 = vmatpush2.msra.mxu0 0.0
    %318 = vmatprep.subr.mxu0 0.0
    %319 = vmatpush2.msra.mxu0 0.0
    %320 = vmatprep.subr.mxu0 0.0
    %321 = vmatpush2.msra.mxu0 0.0
    %322 = vmatprep.subr.mxu0 0.0
    %323 = vmatpush2.msra.mxu0 0.0
    %324 = vmatprep.subr.mxu0 0.0
    %325 = vmatpush2.msra.mxu0 0.0
    %326 = vmatprep.subr.mxu0 0.0
    %327 = vmatpush2.msra.mxu0 0.0
    %328 = vmatprep.subr.mxu0 0.0
    %329 = vmatpush2.msra.mxu0 0.0
    %330 = vmatprep.subr.mxu0 0.0
    %331 = vmatpush2.msra.mxu0 0.0
    %332 = vmatprep.subr.mxu0 0.0
    %333 = vmatpush2.msra.mxu0 0.0
    %334 = vmatprep.subr.mxu0 0.0
    %335 = vmatpush2.msra.mxu0 0.0
    %336 = vmatprep.subr.mxu0 0.0
    %337 = vmatpush2.msra.mxu0 0.0
    %338 = vmatprep.subr.mxu0 0.0
    %339 = vmatpush2.msra.mxu0 0.0
    %340 = vmatprep.subr.mxu0 0.0
    %341 = vmatpush2.msra.mxu0 0.0
    %342 = vmatprep.subr.mxu0 0.0
    %343 = vmatpush2.msra.mxu0 0.0
    %344 = vmatprep.subr.mxu0 0.0
    %345 = vmatpush2.msra.mxu0 0.0
    %346 = vmatprep.subr.mxu0 0.0
    %347 = vmatpush2.msra.mxu0 0.0
    %348 = vmatprep.mubr.f32.mxu0 0.0
    %349 = vmatmul.mubr.f32.gmra.mxu0 %v260
    %v350 = vpop.f32.mrf.mxu0
    %v351 = vadd.f32 %v282, %v350
    %v352 = vpop.f32.mrf.mxu0
    %353 = vdwg.mxu0
    %v354 = vmul.f32 %v351, 0.01
    %v355 = vmax.f32 %v351, %v354
    %v356 = vld [vmem:[%s7] sm:$0x1]
    %s357 = sld [smem:[#allocation2]]
    %v358 = vstv %s357
    %359 = vmatprep.subr.mxu0 0.0
    %360 = vmatpush1.xpose.msra.mxu0 0.0
    %361 = vmatprep.subr.mxu0 0.0
    %362 = vmatpush1.xpose.msra.mxu0 0.0
    %363 = vmatprep.subr.mxu0 0.0
    %364 = vmatpush1.xpose.msra.mxu0 0.0
    %365 = vmatprep.subr.mxu0 0.0
    %366 = vmatpush1.xpose.msra.mxu0 0.0
    %367 = vmatprep.subr.mxu0 0.0
    %368 = vmatpush1.xpose.msra.mxu0 0.0
    %369 = vmatprep.subr.mxu0 0.0
    %370 = vmatpush1.xpose.msra.mxu0 0.0
    %371 = vmatprep.subr.mxu0 0.0
    %372 = vmatpush1.xpose.msra.mxu0 0.0
    %373 = vmatprep.subr.mxu0 0.0
    %374 = vmatpush1.xpose.msra.mxu0 0.0
    %375 = vmatprep.subr.mxu0 0.0
    %376 = vmatpush1.xpose.msra.mxu0 0.0
    %377 = vmatprep.subr.mxu0 0.0
    %378 = vmatpush1.xpose.msra.mxu0 0.0
    %379 = vmatprep.subr.mxu0 0.0
    %380 = vmatpush1.xpose.msra.mxu0 0.0
    %381 = vmatprep.subr.mxu0 0.0
    %382 = vmatpush1.xpose.msra.mxu0 0.0
    %383 = vmatprep.subr.mxu0 0.0
    %384 = vmatpush1.xpose.msra.mxu0 0.0
    %385 = vmatprep.subr.mxu0 0.0
    %386 = vmatpush1.xpose.msra.mxu0 0.0
    %387 = vmatprep.subr.mxu0 0.0
    %388 = vmatpush1.xpose.msra.mxu0 0.0
    %389 = vmatprep.subr.mxu0 0.0
    %390 = vmatpush1.xpose.msra.mxu0 %v355
    %391 = vmatprep.subr.mxu0 0.0
    %392 = vmatpush2.xpose.msra.mxu0 0.0
    %393 = vmatprep.subr.mxu0 0.0
    %394 = vmatpush2.xpose.msra.mxu0 0.0
    %395 = vmatprep.subr.mxu0 0.0
    %396 = vmatpush2.xpose.msra.mxu0 0.0
    %397 = vmatprep.subr.mxu0 0.0
    %398 = vmatpush2.xpose.msra.mxu0 0.0
    %399 = vmatprep.subr.mxu0 0.0
    %400 = vmatpush2.xpose.msra.mxu0 0.0
    %401 = vmatprep.subr.mxu0 0.0
    %402 = vmatpush2.xpose.msra.mxu0 0.0
    %403 = vmatprep.subr.mxu0 0.0
    %404 = vmatpush2.xpose.msra.mxu0 0.0
    %405 = vmatprep.subr.mxu0 0.0
    %406 = vmatpush2.xpose.msra.mxu0 0.0
    %407 = vmatprep.subr.mxu0 0.0
    %408 = vmatpush2.xpose.msra.mxu0 0.0
    %409 = vmatprep.subr.mxu0 0.0
    %410 = vmatpush2.xpose.msra.mxu0 0.0
    %411 = vmatprep.subr.mxu0 0.0
    %412 = vmatpush2.xpose.msra.mxu0 0.0
    %413 = vmatprep.subr.mxu0 0.0
    %414 = vmatpush2.xpose.msra.mxu0 0.0
    %415 = vmatprep.subr.mxu0 0.0
    %416 = vmatpush2.xpose.msra.mxu0 0.0
    %417 = vmatprep.subr.mxu0 0.0
    %418 = vmatpush2.xpose.msra.mxu0 0.0
    %419 = vmatprep.subr.mxu0 0.0
    %420 = vmatpush2.xpose.msra.mxu0 0.0
    %421 = vmatprep.subr.mxu0 0.0
    %422 = vmatpush2.xpose.msra.mxu0 0.0
    %423 = vmatprep.mubr.f32.mxu0 0.0
    %424 = vmatmul.mubr.f32.gmra.mxu0 %v356
    %v425 = vpop.f32.mrf.mxu0
    %v426 = vadd.f32 %v358, %v425
    %v427 = vpop.f32.mrf.mxu0
    %428 = vdwg.mxu0
    %vm429 = vcmask 57344
    %430 = vst.msk [vmem:[#allocation12] sm:$0x1] %vm429, %v426
    // Predicated region
    $region58: #{tpu_custom_call.1} parent=1 // pred_check
      _
    $region59: #{tpu_custom_call.1} parent=1 // pred_check_branch
      %432 = sbr.rel (0) target = $region61
    $region60: #{tpu_custom_call.1} parent=1 // pred_region
      %s434 = ssub.s32 16, 16
      %435 = vsyncadd [#allocation5], %s434
      %s437 = sshll.u32 [#allocation12], 4
      %s438 = int_to_ptr.vmem [resolvable:$true] %s437
      %440 = dma.vmem_to_hbm [thread:$0]  %s438, 16, %s9, [#allocation5]
    $region61: #{tpu_custom_call.1} parent=1 // pred_fallthru
      _
    // Predicated region
    $region62: #{tpu_custom_call.1} parent=1 // pred_check
      _
    $region63: #{tpu_custom_call.1} parent=1 // pred_check_branch
      %442 = sbr.rel (0) target = $region65
    $region64: #{tpu_custom_call.1} parent=1 // pred_region
      %443 = dma.done [#allocation5], 16
    $region65: #{tpu_custom_call.1} parent=1 // pred_fallthru
      _
    %444 = vsyncpa [#allocation4], 1
    %445 = vsyncpa [#allocation7], 1
    %446 = vsyncpa [#allocation10], 1
    %447 = vsyncpa [#allocation5], 1

</llo_original>
